<compile_context>
chip_gen: v5e
topology: v5e:2x2
jax: 0.10.0
libtpu: 0.0.40
codegen_flags: <defaults>
</compile_context>

<pallas_src>
import functools

import numpy as np
import jax
import jax.numpy as jnp
from jax import lax
from jax.experimental import pallas as pl
from jax.experimental.pallas import tpu as pltpu


def _round_up(v, m):
    return (v + m - 1) // m * m


def _shift_loss_kernel(x_ref, y_ref, mx_ref, my_ref, o_ref, *,
                       shift, t_real, b_real, block_b, t_pad):
    """One batch tile: per-row best-shift (by Pearson corr) MSE, padded rows -> 0."""
    n_shifts = 2 * shift + 1
    f32 = jnp.float32

    x = x_ref[...].astype(f32)          # (TB, T_pad); padding lanes are zero
    y = y_ref[...].astype(f32)
    mask_x = mx_ref[...]                # (T_pad, n_shifts) 0/1 f32, built on host
    mask_y = my_ref[...]

    # ---- shared per-row centering (keeps raw moments well conditioned; Pearson
    #      and MSE are both invariant to subtracting the SAME constant per row) ----
    c = jnp.sum(x + y, axis=1, keepdims=True) * (0.5 / float(t_real))   # (TB, 1)
    xc = x - c
    yc = y - c

    # Per-shift window length and reciprocal, (1, n_shifts).
    s_lane = lax.broadcasted_iota(jnp.int32, (1, n_shifts), 1)
    l_row = (t_real - jnp.abs(s_lane - shift)).astype(f32)
    inv_l = 1.0 / l_row

    # ---- windowed raw moments of x and y for ALL shifts at once: two stacked
    #      MXU matmuls (M = 2*TB) against the 0/1 window masks ----
    mom_x = jnp.dot(jnp.concatenate([xc, xc * xc], axis=0), mask_x,
                    preferred_element_type=f32)              # (2*TB, n_shifts)
    mom_y = jnp.dot(jnp.concatenate([yc, yc * yc], axis=0), mask_y,
                    preferred_element_type=f32)
    sx, sxx = mom_x[:block_b], mom_x[block_b:]
    sy, syy = mom_y[:block_b], mom_y[block_b:]

    # ---- per-shift windowed squared error Σ (x - y_shifted)^2 (feeds the MSE,
    #      kept exact): one XLU lane-rotate + one small MXU matmul + one lane
    #      select per shift.  Window masking comes from the 0/1 mask columns
    #      inside the matmul (exact f32 accumulation with a 0/1 RHS). ----
    sd2 = jnp.zeros((block_b, n_shifts), f32)
    for s in range(-shift, shift + 1):
        s_idx = s + shift
        # y aligned into the x frame: y_al[t] = y[t + s].
        y_al = yc if s == 0 else pltpu.roll(yc, (-s) % t_pad, axis=1)
        diff = xc - y_al
        sd2_s = jnp.dot(diff * diff, mask_x, preferred_element_type=f32)
        sd2 = jnp.where(s_lane == s_idx, sd2_s, sd2)

    # ---- cross moment derived from the MXU moments + sd2 (feeds only the
    #      Pearson argmax, which tolerates the cancellation) ----
    sxy = 0.5 * (sxx + syy - sd2)

    # ---- Pearson correlation per (row, shift) ----
    cov = sxy - sx * sy * inv_l
    var_x = jnp.maximum(sxx - sx * sx * inv_l, 0.0)
    var_y = jnp.maximum(syy - sy * sy * inv_l, 0.0)
    denom = var_x * var_y
    # scale-relative eps guard: flat windows give corr ~ 0 instead of NaN
    # (the reference would NaN there); attenuation is uniform at 1e-12 of the
    # per-row peak, so it cannot reorder a real correlation peak.
    eps = jnp.max(denom, axis=1, keepdims=True) * 1e-12 + 1e-30
    corr = cov * lax.rsqrt(denom + eps)

    # ---- first-argmax over shifts (torch.argmax tie-break), select that MSE ----
    # NOTE: tie-break relies on exact equality with the max copied out of corr.
    best = jnp.max(corr, axis=1, keepdims=True)
    idx = lax.broadcasted_iota(jnp.int32, (block_b, n_shifts), 1)
    best_idx = jnp.min(jnp.where(corr == best, idx, n_shifts), axis=1, keepdims=True)
    mse = sd2 * inv_l
    per_row = jnp.sum(jnp.where(idx == best_idx, mse, 0.0), axis=1, keepdims=True)

    # mask padded batch rows
    row = lax.broadcasted_iota(jnp.int32, (block_b, 1), 0) + pl.program_id(0) * block_b
    per_row = jnp.where(row < b_real, per_row, 0.0)

    # lane-dense output block; wrapper divides by 128.
    o_ref[...] = jnp.broadcast_to(per_row, (block_b, 128))


def shift_loss(x, y, shift=10):
    """Pallas ShiftLoss with fn = MSE.  x, y: (B, T) float.  Returns f32 scalar."""
    B, T = x.shape
    assert y.shape == (B, T)
    assert T > shift, "temporal length must exceed the shift range"
    n_shifts = 2 * shift + 1

    t_pad = _round_up(T, 128)           # lane width
    b8 = _round_up(B, 8)                # sublane count

    # Split batch over >= 2 grid steps whenever it fits (v7x has 2 TCs); cap the
    # tile at 32 rows so the fully unrolled shift loop stays clear of the
    # 64-vreg ceiling (matters most for v5e's single vector-store slot).
    block_b = max(8, min(32, _round_up((b8 + 1) // 2, 8)))

    # VMEM working set per step: 2 inputs x 2 pipeline buffers plus ~10 f32
    # temporaries (xc, yc, squares, stacked LHS, y_al, diff, diff^2, ...), plus
    # the double-buffered window masks.
    def _est(bb):
        return (2 * 2 + 10) * bb * t_pad * 4 + 2 * 2 * t_pad * n_shifts * 4

    while block_b > 8 and _est(block_b) > (12 << 20):
        block_b = max(8, (block_b // 2) // 8 * 8)
    b_pad = _round_up(B, block_b)
    grid = (b_pad // block_b,)

    x_p = jnp.pad(x, ((0, b_pad - B), (0, t_pad - T)))
    y_p = jnp.pad(y, ((0, b_pad - B), (0, t_pad - T)))

    # Static 0/1 window-mask matrices (grid-invariant): column s selects the
    # x-frame / y-frame window of shift s; all windows live in [0, T) so padded
    # lanes are always masked out.
    t_idx = np.arange(t_pad)[:, None]
    s_val = np.arange(n_shifts)[None, :] - shift
    win_l = T - np.abs(s_val)
    ox = np.maximum(-s_val, 0)
    oy = np.maximum(s_val, 0)
    mask_x = jnp.asarray(((t_idx >= ox) & (t_idx < ox + win_l)).astype(np.float32))
    mask_y = jnp.asarray(((t_idx >= oy) & (t_idx < oy + win_l)).astype(np.float32))

    kernel = functools.partial(
        _shift_loss_kernel, shift=shift, t_real=T, b_real=B,
        block_b=block_b, t_pad=t_pad)

    out = pl.pallas_call(
        kernel,
        out_shape=jax.ShapeDtypeStruct((b_pad, 128), jnp.float32),
        grid=grid,
        in_specs=[pl.BlockSpec((block_b, t_pad), lambda i: (i, 0)),
                  pl.BlockSpec((block_b, t_pad), lambda i: (i, 0)),
                  pl.BlockSpec((t_pad, n_shifts), lambda i: (0, 0)),
                  pl.BlockSpec((t_pad, n_shifts), lambda i: (0, 0))],
        out_specs=pl.BlockSpec((block_b, 128), lambda i: (i, 0)),
        compiler_params=pltpu.CompilerParams(
            dimension_semantics=("parallel",),
            vmem_limit_bytes=32 * 1024 * 1024),
    )(x_p, y_p, mask_x, mask_y)

    # Every lane of a row holds the same per-row loss; padded rows are zero.
    return jnp.sum(out) / (128.0 * B)


# ----------------------------------------------------------------------------
# Pure numpy reference (mirrors the PyTorch module with fn = MSE), float64.
# ----------------------------------------------------------------------------
def _getview(xs, ys, sf):
    if sf < 0:
        return xs[-sf:], ys[:sf]
    elif sf == 0:
        return xs, ys
    else:
        return xs[:-sf], ys[sf:]


def shift_loss_ref(x, y, shift=10):
    x = np.asarray(x, dtype=np.float64)
    y = np.asarray(y, dtype=np.float64)
    res = []
    for j in range(x.shape[0]):
        xs, ys = x[j], y[j]
        corrs = []
        for s in range(-shift, shift + 1):
            xw, yw = _getview(xs, ys, s)
            corrs.append(np.corrcoef(np.stack([xw, yw], 0))[0, 1])
        best = int(np.argmax(np.asarray(corrs))) - shift
        xw, yw = _getview(xs, ys, best)
        res.append(np.mean((xw - yw) ** 2))
    return float(np.mean(res))


if __name__ == "__main__":
    B, T, SHIFT = 4, 64, 10

    key = jax.random.PRNGKey(0)
    kx, kn = jax.random.split(key, 2)
    x = jax.random.normal(kx, (B, T), dtype=jnp.float32)
    # Build y as a clearly-shifted copy of x (+ small noise) so the best-shift
    # correlation peak is unambiguous for each batch row.
    per_row_shift = [3, -5, 0, 7]
    y = jnp.stack([jnp.roll(x[j], per_row_shift[j]) for j in range(B)], axis=0)
    y = y + 0.05 * jax.random.normal(kn, (B, T), dtype=jnp.float32)

    out = jax.block_until_ready(shift_loss(x, y, shift=SHIFT))
    ref = shift_loss_ref(np.asarray(x), np.asarray(y), shift=SHIFT)

    np.testing.assert_allclose(np.asarray(out), ref, rtol=2e-4, atol=1e-6)
    print("KERNEL_OK")
</pallas_src>

<mosaic_0001>
module attributes {stable_mosaic.version = 11 : i64} {
  func.func @_shift_loss_kernel(%arg0: i32, %arg1: memref<8x128xf32, #tpu.memory_space<vmem>>, %arg2: memref<8x128xf32, #tpu.memory_space<vmem>>, %arg3: memref<128x21xf32, #tpu.memory_space<vmem>>, %arg4: memref<128x21xf32, #tpu.memory_space<vmem>>, %arg5: memref<8x128xf32, #tpu.memory_space<vmem>>) attributes {dimension_semantics = [#tpu.dimension_semantics<parallel>], iteration_bounds = array<i64: 1>, scalar_prefetch = 0 : i64, scratch_operands = 0 : i64, tpu.core_type = #tpu.core_type<tc>, window_params = [{transform_indices = @transform_0, window_bounds = array<i64: 8, 128>}, {transform_indices = @transform_1, window_bounds = array<i64: 8, 128>}, {pipeline_mode = #tpu.pipeline_mode<synchronous>, transform_indices = @transform_2, window_bounds = array<i64: 128, 21>}, {pipeline_mode = #tpu.pipeline_mode<synchronous>, transform_indices = @transform_3, window_bounds = array<i64: 128, 21>}, {transform_indices = @transform_4, window_bounds = array<i64: 8, 128>}]} {
    %c0 = arith.constant 0 : index
    %c0_0 = arith.constant 0 : index
    %0 = vector.load %arg1[%c0, %c0_0] : memref<8x128xf32, #tpu.memory_space<vmem>>, vector<8x128xf32>
    %c0_1 = arith.constant 0 : index
    %c0_2 = arith.constant 0 : index
    %1 = vector.load %arg2[%c0_1, %c0_2] : memref<8x128xf32, #tpu.memory_space<vmem>>, vector<8x128xf32>
    %c0_3 = arith.constant 0 : index
    %c0_4 = arith.constant 0 : index
    %2 = vector.load %arg3[%c0_3, %c0_4] : memref<128x21xf32, #tpu.memory_space<vmem>>, vector<128x21xf32>
    %c0_5 = arith.constant 0 : index
    %c0_6 = arith.constant 0 : index
    %3 = vector.load %arg4[%c0_5, %c0_6] : memref<128x21xf32, #tpu.memory_space<vmem>>, vector<128x21xf32>
    %4 = arith.addf %0, %1 : vector<8x128xf32>
    %cst = arith.constant dense<0.000000e+00> : vector<8xf32>
    %5 = vector.multi_reduction <add>, %4, %cst [1] : vector<8x128xf32> to vector<8xf32>
    %6 = vector.shape_cast %5 : vector<8xf32> to vector<8x1xf32>
    %cst_7 = arith.constant 7.812500e-03 : f32
    %7 = vector.broadcast %cst_7 : f32 to vector<8x1xf32>
    %8 = arith.mulf %6, %7 : vector<8x1xf32>
    %9 = vector.broadcast %8 : vector<8x1xf32> to vector<8x128xf32>
    %10 = arith.subf %0, %9 : vector<8x128xf32>
    %11 = vector.broadcast %8 : vector<8x1xf32> to vector<8x128xf32>
    %12 = arith.subf %1, %11 : vector<8x128xf32>
    %13 = tpu.iota {dimensions = array<i32: 1>} : vector<1x21xi32>
    %c10_i32 = arith.constant 10 : i32
    %14 = vector.broadcast %c10_i32 : i32 to vector<1x21xi32>
    %15 = arith.subi %13, %14 : vector<1x21xi32>
    %16 = math.absi %15 : vector<1x21xi32>
    %c64_i32 = arith.constant 64 : i32
    %17 = vector.broadcast %c64_i32 : i32 to vector<1x21xi32>
    %18 = arith.subi %17, %16 : vector<1x21xi32>
    %19 = arith.sitofp %18 : vector<1x21xi32> to vector<1x21xf32>
    %cst_8 = arith.constant 1.000000e+00 : f32
    %20 = vector.broadcast %cst_8 : f32 to vector<1x21xf32>
    %21 = arith.divf %20, %19 : vector<1x21xf32>
    %22 = arith.mulf %10, %10 : vector<8x128xf32>
    %23 = tpu.concatenate %10, %22 in 0 : vector<8x128xf32>, vector<8x128xf32> -> vector<16x128xf32>
    %cst_9 = arith.constant dense<0.000000e+00> : vector<16x21xf32>
    %24 = tpu.matmul %23, %2, %cst_9 {dimension_numbers = #tpu.dot_dimension_numbers<[1], [0], [0], [1], [0, 0, 1, 1], [], []>} : vector<16x128xf32>, vector<128x21xf32>, vector<16x21xf32> -> vector<16x21xf32>
    %25 = arith.mulf %12, %12 : vector<8x128xf32>
    %26 = tpu.concatenate %12, %25 in 0 : vector<8x128xf32>, vector<8x128xf32> -> vector<16x128xf32>
    %cst_10 = arith.constant dense<0.000000e+00> : vector<16x21xf32>
    %27 = tpu.matmul %26, %3, %cst_10 {dimension_numbers = #tpu.dot_dimension_numbers<[1], [0], [0], [1], [0, 0, 1, 1], [], []>} : vector<16x128xf32>, vector<128x21xf32>, vector<16x21xf32> -> vector<16x21xf32>
    %28 = vector.extract_strided_slice %24 {offsets = [0, 0], sizes = [8, 21], strides = [1, 1]} : vector<16x21xf32> to vector<8x21xf32>
    %29 = vector.extract_strided_slice %24 {offsets = [8, 0], sizes = [8, 21], strides = [1, 1]} : vector<16x21xf32> to vector<8x21xf32>
    %30 = vector.extract_strided_slice %27 {offsets = [0, 0], sizes = [8, 21], strides = [1, 1]} : vector<16x21xf32> to vector<8x21xf32>
    %31 = vector.extract_strided_slice %27 {offsets = [8, 0], sizes = [8, 21], strides = [1, 1]} : vector<16x21xf32> to vector<8x21xf32>
    %cst_11 = arith.constant 0.000000e+00 : f32
    %32 = vector.broadcast %cst_11 : f32 to vector<8x21xf32>
    %c10_i32_12 = arith.constant 10 : i32
    %33 = tpu.dynamic_rotate %12 by %c10_i32_12 dim 1 : vector<8x128xf32>, i32 -> vector<8x128xf32>
    %34 = arith.subf %10, %33 : vector<8x128xf32>
    %35 = arith.mulf %34, %34 : vector<8x128xf32>
    %cst_13 = arith.constant dense<0.000000e+00> : vector<8x21xf32>
    %36 = tpu.matmul %35, %2, %cst_13 {dimension_numbers = #tpu.dot_dimension_numbers<[1], [0], [0], [1], [0, 0, 1, 1], [], []>} : vector<8x128xf32>, vector<128x21xf32>, vector<8x21xf32> -> vector<8x21xf32>
    %c0_i32 = arith.constant 0 : i32
    %37 = vector.broadcast %c0_i32 : i32 to vector<1x21xi32>
    %38 = arith.cmpi eq, %13, %37 : vector<1x21xi32>
    %39 = vector.shape_cast %38 : vector<1x21xi1> to vector<1x21xi1>
    %40 = vector.broadcast %39 : vector<1x21xi1> to vector<8x21xi1>
    %41 = arith.select %40, %36, %32 : vector<8x21xi1>, vector<8x21xf32>
    %c9_i32 = arith.constant 9 : i32
    %42 = tpu.dynamic_rotate %12 by %c9_i32 dim 1 : vector<8x128xf32>, i32 -> vector<8x128xf32>
    %43 = arith.subf %10, %42 : vector<8x128xf32>
    %44 = arith.mulf %43, %43 : vector<8x128xf32>
    %cst_14 = arith.constant dense<0.000000e+00> : vector<8x21xf32>
    %45 = tpu.matmul %44, %2, %cst_14 {dimension_numbers = #tpu.dot_dimension_numbers<[1], [0], [0], [1], [0, 0, 1, 1], [], []>} : vector<8x128xf32>, vector<128x21xf32>, vector<8x21xf32> -> vector<8x21xf32>
    %c1_i32 = arith.constant 1 : i32
    %46 = vector.broadcast %c1_i32 : i32 to vector<1x21xi32>
    %47 = arith.cmpi eq, %13, %46 : vector<1x21xi32>
    %48 = vector.shape_cast %47 : vector<1x21xi1> to vector<1x21xi1>
    %49 = vector.broadcast %48 : vector<1x21xi1> to vector<8x21xi1>
    %50 = arith.select %49, %45, %41 : vector<8x21xi1>, vector<8x21xf32>
    %c8_i32 = arith.constant 8 : i32
    %51 = tpu.dynamic_rotate %12 by %c8_i32 dim 1 : vector<8x128xf32>, i32 -> vector<8x128xf32>
    %52 = arith.subf %10, %51 : vector<8x128xf32>
    %53 = arith.mulf %52, %52 : vector<8x128xf32>
    %cst_15 = arith.constant dense<0.000000e+00> : vector<8x21xf32>
    %54 = tpu.matmul %53, %2, %cst_15 {dimension_numbers = #tpu.dot_dimension_numbers<[1], [0], [0], [1], [0, 0, 1, 1], [], []>} : vector<8x128xf32>, vector<128x21xf32>, vector<8x21xf32> -> vector<8x21xf32>
    %c2_i32 = arith.constant 2 : i32
    %55 = vector.broadcast %c2_i32 : i32 to vector<1x21xi32>
    %56 = arith.cmpi eq, %13, %55 : vector<1x21xi32>
    %57 = vector.shape_cast %56 : vector<1x21xi1> to vector<1x21xi1>
    %58 = vector.broadcast %57 : vector<1x21xi1> to vector<8x21xi1>
    %59 = arith.select %58, %54, %50 : vector<8x21xi1>, vector<8x21xf32>
    %c7_i32 = arith.constant 7 : i32
    %60 = tpu.dynamic_rotate %12 by %c7_i32 dim 1 : vector<8x128xf32>, i32 -> vector<8x128xf32>
    %61 = arith.subf %10, %60 : vector<8x128xf32>
    %62 = arith.mulf %61, %61 : vector<8x128xf32>
    %cst_16 = arith.constant dense<0.000000e+00> : vector<8x21xf32>
    %63 = tpu.matmul %62, %2, %cst_16 {dimension_numbers = #tpu.dot_dimension_numbers<[1], [0], [0], [1], [0, 0, 1, 1], [], []>} : vector<8x128xf32>, vector<128x21xf32>, vector<8x21xf32> -> vector<8x21xf32>
    %c3_i32 = arith.constant 3 : i32
    %64 = vector.broadcast %c3_i32 : i32 to vector<1x21xi32>
    %65 = arith.cmpi eq, %13, %64 : vector<1x21xi32>
    %66 = vector.shape_cast %65 : vector<1x21xi1> to vector<1x21xi1>
    %67 = vector.broadcast %66 : vector<1x21xi1> to vector<8x21xi1>
    %68 = arith.select %67, %63, %59 : vector<8x21xi1>, vector<8x21xf32>
    %c6_i32 = arith.constant 6 : i32
    %69 = tpu.dynamic_rotate %12 by %c6_i32 dim 1 : vector<8x128xf32>, i32 -> vector<8x128xf32>
    %70 = arith.subf %10, %69 : vector<8x128xf32>
    %71 = arith.mulf %70, %70 : vector<8x128xf32>
    %cst_17 = arith.constant dense<0.000000e+00> : vector<8x21xf32>
    %72 = tpu.matmul %71, %2, %cst_17 {dimension_numbers = #tpu.dot_dimension_numbers<[1], [0], [0], [1], [0, 0, 1, 1], [], []>} : vector<8x128xf32>, vector<128x21xf32>, vector<8x21xf32> -> vector<8x21xf32>
    %c4_i32 = arith.constant 4 : i32
    %73 = vector.broadcast %c4_i32 : i32 to vector<1x21xi32>
    %74 = arith.cmpi eq, %13, %73 : vector<1x21xi32>
    %75 = vector.shape_cast %74 : vector<1x21xi1> to vector<1x21xi1>
    %76 = vector.broadcast %75 : vector<1x21xi1> to vector<8x21xi1>
    %77 = arith.select %76, %72, %68 : vector<8x21xi1>, vector<8x21xf32>
    %c5_i32 = arith.constant 5 : i32
    %78 = tpu.dynamic_rotate %12 by %c5_i32 dim 1 : vector<8x128xf32>, i32 -> vector<8x128xf32>
    %79 = arith.subf %10, %78 : vector<8x128xf32>
    %80 = arith.mulf %79, %79 : vector<8x128xf32>
    %cst_18 = arith.constant dense<0.000000e+00> : vector<8x21xf32>
    %81 = tpu.matmul %80, %2, %cst_18 {dimension_numbers = #tpu.dot_dimension_numbers<[1], [0], [0], [1], [0, 0, 1, 1], [], []>} : vector<8x128xf32>, vector<128x21xf32>, vector<8x21xf32> -> vector<8x21xf32>
    %c5_i32_19 = arith.constant 5 : i32
    %82 = vector.broadcast %c5_i32_19 : i32 to vector<1x21xi32>
    %83 = arith.cmpi eq, %13, %82 : vector<1x21xi32>
    %84 = vector.shape_cast %83 : vector<1x21xi1> to vector<1x21xi1>
    %85 = vector.broadcast %84 : vector<1x21xi1> to vector<8x21xi1>
    %86 = arith.select %85, %81, %77 : vector<8x21xi1>, vector<8x21xf32>
    %c4_i32_20 = arith.constant 4 : i32
    %87 = tpu.dynamic_rotate %12 by %c4_i32_20 dim 1 : vector<8x128xf32>, i32 -> vector<8x128xf32>
    %88 = arith.subf %10, %87 : vector<8x128xf32>
    %89 = arith.mulf %88, %88 : vector<8x128xf32>
    %cst_21 = arith.constant dense<0.000000e+00> : vector<8x21xf32>
    %90 = tpu.matmul %89, %2, %cst_21 {dimension_numbers = #tpu.dot_dimension_numbers<[1], [0], [0], [1], [0, 0, 1, 1], [], []>} : vector<8x128xf32>, vector<128x21xf32>, vector<8x21xf32> -> vector<8x21xf32>
    %c6_i32_22 = arith.constant 6 : i32
    %91 = vector.broadcast %c6_i32_22 : i32 to vector<1x21xi32>
    %92 = arith.cmpi eq, %13, %91 : vector<1x21xi32>
    %93 = vector.shape_cast %92 : vector<1x21xi1> to vector<1x21xi1>
    %94 = vector.broadcast %93 : vector<1x21xi1> to vector<8x21xi1>
    %95 = arith.select %94, %90, %86 : vector<8x21xi1>, vector<8x21xf32>
    %c3_i32_23 = arith.constant 3 : i32
    %96 = tpu.dynamic_rotate %12 by %c3_i32_23 dim 1 : vector<8x128xf32>, i32 -> vector<8x128xf32>
    %97 = arith.subf %10, %96 : vector<8x128xf32>
    %98 = arith.mulf %97, %97 : vector<8x128xf32>
    %cst_24 = arith.constant dense<0.000000e+00> : vector<8x21xf32>
    %99 = tpu.matmul %98, %2, %cst_24 {dimension_numbers = #tpu.dot_dimension_numbers<[1], [0], [0], [1], [0, 0, 1, 1], [], []>} : vector<8x128xf32>, vector<128x21xf32>, vector<8x21xf32> -> vector<8x21xf32>
    %c7_i32_25 = arith.constant 7 : i32
    %100 = vector.broadcast %c7_i32_25 : i32 to vector<1x21xi32>
    %101 = arith.cmpi eq, %13, %100 : vector<1x21xi32>
    %102 = vector.shape_cast %101 : vector<1x21xi1> to vector<1x21xi1>
    %103 = vector.broadcast %102 : vector<1x21xi1> to vector<8x21xi1>
    %104 = arith.select %103, %99, %95 : vector<8x21xi1>, vector<8x21xf32>
    %c2_i32_26 = arith.constant 2 : i32
    %105 = tpu.dynamic_rotate %12 by %c2_i32_26 dim 1 : vector<8x128xf32>, i32 -> vector<8x128xf32>
    %106 = arith.subf %10, %105 : vector<8x128xf32>
    %107 = arith.mulf %106, %106 : vector<8x128xf32>
    %cst_27 = arith.constant dense<0.000000e+00> : vector<8x21xf32>
    %108 = tpu.matmul %107, %2, %cst_27 {dimension_numbers = #tpu.dot_dimension_numbers<[1], [0], [0], [1], [0, 0, 1, 1], [], []>} : vector<8x128xf32>, vector<128x21xf32>, vector<8x21xf32> -> vector<8x21xf32>
    %c8_i32_28 = arith.constant 8 : i32
    %109 = vector.broadcast %c8_i32_28 : i32 to vector<1x21xi32>
    %110 = arith.cmpi eq, %13, %109 : vector<1x21xi32>
    %111 = vector.shape_cast %110 : vector<1x21xi1> to vector<1x21xi1>
    %112 = vector.broadcast %111 : vector<1x21xi1> to vector<8x21xi1>
    %113 = arith.select %112, %108, %104 : vector<8x21xi1>, vector<8x21xf32>
    %c1_i32_29 = arith.constant 1 : i32
    %114 = tpu.dynamic_rotate %12 by %c1_i32_29 dim 1 : vector<8x128xf32>, i32 -> vector<8x128xf32>
    %115 = arith.subf %10, %114 : vector<8x128xf32>
    %116 = arith.mulf %115, %115 : vector<8x128xf32>
    %cst_30 = arith.constant dense<0.000000e+00> : vector<8x21xf32>
    %117 = tpu.matmul %116, %2, %cst_30 {dimension_numbers = #tpu.dot_dimension_numbers<[1], [0], [0], [1], [0, 0, 1, 1], [], []>} : vector<8x128xf32>, vector<128x21xf32>, vector<8x21xf32> -> vector<8x21xf32>
    %c9_i32_31 = arith.constant 9 : i32
    %118 = vector.broadcast %c9_i32_31 : i32 to vector<1x21xi32>
    %119 = arith.cmpi eq, %13, %118 : vector<1x21xi32>
    %120 = vector.shape_cast %119 : vector<1x21xi1> to vector<1x21xi1>
    %121 = vector.broadcast %120 : vector<1x21xi1> to vector<8x21xi1>
    %122 = arith.select %121, %117, %113 : vector<8x21xi1>, vector<8x21xf32>
    %123 = arith.subf %10, %12 : vector<8x128xf32>
    %124 = arith.mulf %123, %123 : vector<8x128xf32>
    %cst_32 = arith.constant dense<0.000000e+00> : vector<8x21xf32>
    %125 = tpu.matmul %124, %2, %cst_32 {dimension_numbers = #tpu.dot_dimension_numbers<[1], [0], [0], [1], [0, 0, 1, 1], [], []>} : vector<8x128xf32>, vector<128x21xf32>, vector<8x21xf32> -> vector<8x21xf32>
    %c10_i32_33 = arith.constant 10 : i32
    %126 = vector.broadcast %c10_i32_33 : i32 to vector<1x21xi32>
    %127 = arith.cmpi eq, %13, %126 : vector<1x21xi32>
    %128 = vector.shape_cast %127 : vector<1x21xi1> to vector<1x21xi1>
    %129 = vector.broadcast %128 : vector<1x21xi1> to vector<8x21xi1>
    %130 = arith.select %129, %125, %122 : vector<8x21xi1>, vector<8x21xf32>
    %c127_i32 = arith.constant 127 : i32
    %131 = tpu.dynamic_rotate %12 by %c127_i32 dim 1 : vector<8x128xf32>, i32 -> vector<8x128xf32>
    %132 = arith.subf %10, %131 : vector<8x128xf32>
    %133 = arith.mulf %132, %132 : vector<8x128xf32>
    %cst_34 = arith.constant dense<0.000000e+00> : vector<8x21xf32>
    %134 = tpu.matmul %133, %2, %cst_34 {dimension_numbers = #tpu.dot_dimension_numbers<[1], [0], [0], [1], [0, 0, 1, 1], [], []>} : vector<8x128xf32>, vector<128x21xf32>, vector<8x21xf32> -> vector<8x21xf32>
    %c11_i32 = arith.constant 11 : i32
    %135 = vector.broadcast %c11_i32 : i32 to vector<1x21xi32>
    %136 = arith.cmpi eq, %13, %135 : vector<1x21xi32>
    %137 = vector.shape_cast %136 : vector<1x21xi1> to vector<1x21xi1>
    %138 = vector.broadcast %137 : vector<1x21xi1> to vector<8x21xi1>
    %139 = arith.select %138, %134, %130 : vector<8x21xi1>, vector<8x21xf32>
    %c126_i32 = arith.constant 126 : i32
    %140 = tpu.dynamic_rotate %12 by %c126_i32 dim 1 : vector<8x128xf32>, i32 -> vector<8x128xf32>
    %141 = arith.subf %10, %140 : vector<8x128xf32>
    %142 = arith.mulf %141, %141 : vector<8x128xf32>
    %cst_35 = arith.constant dense<0.000000e+00> : vector<8x21xf32>
    %143 = tpu.matmul %142, %2, %cst_35 {dimension_numbers = #tpu.dot_dimension_numbers<[1], [0], [0], [1], [0, 0, 1, 1], [], []>} : vector<8x128xf32>, vector<128x21xf32>, vector<8x21xf32> -> vector<8x21xf32>
    %c12_i32 = arith.constant 12 : i32
    %144 = vector.broadcast %c12_i32 : i32 to vector<1x21xi32>
    %145 = arith.cmpi eq, %13, %144 : vector<1x21xi32>
    %146 = vector.shape_cast %145 : vector<1x21xi1> to vector<1x21xi1>
    %147 = vector.broadcast %146 : vector<1x21xi1> to vector<8x21xi1>
    %148 = arith.select %147, %143, %139 : vector<8x21xi1>, vector<8x21xf32>
    %c125_i32 = arith.constant 125 : i32
    %149 = tpu.dynamic_rotate %12 by %c125_i32 dim 1 : vector<8x128xf32>, i32 -> vector<8x128xf32>
    %150 = arith.subf %10, %149 : vector<8x128xf32>
    %151 = arith.mulf %150, %150 : vector<8x128xf32>
    %cst_36 = arith.constant dense<0.000000e+00> : vector<8x21xf32>
    %152 = tpu.matmul %151, %2, %cst_36 {dimension_numbers = #tpu.dot_dimension_numbers<[1], [0], [0], [1], [0, 0, 1, 1], [], []>} : vector<8x128xf32>, vector<128x21xf32>, vector<8x21xf32> -> vector<8x21xf32>
    %c13_i32 = arith.constant 13 : i32
    %153 = vector.broadcast %c13_i32 : i32 to vector<1x21xi32>
    %154 = arith.cmpi eq, %13, %153 : vector<1x21xi32>
    %155 = vector.shape_cast %154 : vector<1x21xi1> to vector<1x21xi1>
    %156 = vector.broadcast %155 : vector<1x21xi1> to vector<8x21xi1>
    %157 = arith.select %156, %152, %148 : vector<8x21xi1>, vector<8x21xf32>
    %c124_i32 = arith.constant 124 : i32
    %158 = tpu.dynamic_rotate %12 by %c124_i32 dim 1 : vector<8x128xf32>, i32 -> vector<8x128xf32>
    %159 = arith.subf %10, %158 : vector<8x128xf32>
    %160 = arith.mulf %159, %159 : vector<8x128xf32>
    %cst_37 = arith.constant dense<0.000000e+00> : vector<8x21xf32>
    %161 = tpu.matmul %160, %2, %cst_37 {dimension_numbers = #tpu.dot_dimension_numbers<[1], [0], [0], [1], [0, 0, 1, 1], [], []>} : vector<8x128xf32>, vector<128x21xf32>, vector<8x21xf32> -> vector<8x21xf32>
    %c14_i32 = arith.constant 14 : i32
    %162 = vector.broadcast %c14_i32 : i32 to vector<1x21xi32>
    %163 = arith.cmpi eq, %13, %162 : vector<1x21xi32>
    %164 = vector.shape_cast %163 : vector<1x21xi1> to vector<1x21xi1>
    %165 = vector.broadcast %164 : vector<1x21xi1> to vector<8x21xi1>
    %166 = arith.select %165, %161, %157 : vector<8x21xi1>, vector<8x21xf32>
    %c123_i32 = arith.constant 123 : i32
    %167 = tpu.dynamic_rotate %12 by %c123_i32 dim 1 : vector<8x128xf32>, i32 -> vector<8x128xf32>
    %168 = arith.subf %10, %167 : vector<8x128xf32>
    %169 = arith.mulf %168, %168 : vector<8x128xf32>
    %cst_38 = arith.constant dense<0.000000e+00> : vector<8x21xf32>
    %170 = tpu.matmul %169, %2, %cst_38 {dimension_numbers = #tpu.dot_dimension_numbers<[1], [0], [0], [1], [0, 0, 1, 1], [], []>} : vector<8x128xf32>, vector<128x21xf32>, vector<8x21xf32> -> vector<8x21xf32>
    %c15_i32 = arith.constant 15 : i32
    %171 = vector.broadcast %c15_i32 : i32 to vector<1x21xi32>
    %172 = arith.cmpi eq, %13, %171 : vector<1x21xi32>
    %173 = vector.shape_cast %172 : vector<1x21xi1> to vector<1x21xi1>
    %174 = vector.broadcast %173 : vector<1x21xi1> to vector<8x21xi1>
    %175 = arith.select %174, %170, %166 : vector<8x21xi1>, vector<8x21xf32>
    %c122_i32 = arith.constant 122 : i32
    %176 = tpu.dynamic_rotate %12 by %c122_i32 dim 1 : vector<8x128xf32>, i32 -> vector<8x128xf32>
    %177 = arith.subf %10, %176 : vector<8x128xf32>
    %178 = arith.mulf %177, %177 : vector<8x128xf32>
    %cst_39 = arith.constant dense<0.000000e+00> : vector<8x21xf32>
    %179 = tpu.matmul %178, %2, %cst_39 {dimension_numbers = #tpu.dot_dimension_numbers<[1], [0], [0], [1], [0, 0, 1, 1], [], []>} : vector<8x128xf32>, vector<128x21xf32>, vector<8x21xf32> -> vector<8x21xf32>
    %c16_i32 = arith.constant 16 : i32
    %180 = vector.broadcast %c16_i32 : i32 to vector<1x21xi32>
    %181 = arith.cmpi eq, %13, %180 : vector<1x21xi32>
    %182 = vector.shape_cast %181 : vector<1x21xi1> to vector<1x21xi1>
    %183 = vector.broadcast %182 : vector<1x21xi1> to vector<8x21xi1>
    %184 = arith.select %183, %179, %175 : vector<8x21xi1>, vector<8x21xf32>
    %c121_i32 = arith.constant 121 : i32
    %185 = tpu.dynamic_rotate %12 by %c121_i32 dim 1 : vector<8x128xf32>, i32 -> vector<8x128xf32>
    %186 = arith.subf %10, %185 : vector<8x128xf32>
    %187 = arith.mulf %186, %186 : vector<8x128xf32>
    %cst_40 = arith.constant dense<0.000000e+00> : vector<8x21xf32>
    %188 = tpu.matmul %187, %2, %cst_40 {dimension_numbers = #tpu.dot_dimension_numbers<[1], [0], [0], [1], [0, 0, 1, 1], [], []>} : vector<8x128xf32>, vector<128x21xf32>, vector<8x21xf32> -> vector<8x21xf32>
    %c17_i32 = arith.constant 17 : i32
    %189 = vector.broadcast %c17_i32 : i32 to vector<1x21xi32>
    %190 = arith.cmpi eq, %13, %189 : vector<1x21xi32>
    %191 = vector.shape_cast %190 : vector<1x21xi1> to vector<1x21xi1>
    %192 = vector.broadcast %191 : vector<1x21xi1> to vector<8x21xi1>
    %193 = arith.select %192, %188, %184 : vector<8x21xi1>, vector<8x21xf32>
    %c120_i32 = arith.constant 120 : i32
    %194 = tpu.dynamic_rotate %12 by %c120_i32 dim 1 : vector<8x128xf32>, i32 -> vector<8x128xf32>
    %195 = arith.subf %10, %194 : vector<8x128xf32>
    %196 = arith.mulf %195, %195 : vector<8x128xf32>
    %cst_41 = arith.constant dense<0.000000e+00> : vector<8x21xf32>
    %197 = tpu.matmul %196, %2, %cst_41 {dimension_numbers = #tpu.dot_dimension_numbers<[1], [0], [0], [1], [0, 0, 1, 1], [], []>} : vector<8x128xf32>, vector<128x21xf32>, vector<8x21xf32> -> vector<8x21xf32>
    %c18_i32 = arith.constant 18 : i32
    %198 = vector.broadcast %c18_i32 : i32 to vector<1x21xi32>
    %199 = arith.cmpi eq, %13, %198 : vector<1x21xi32>
    %200 = vector.shape_cast %199 : vector<1x21xi1> to vector<1x21xi1>
    %201 = vector.broadcast %200 : vector<1x21xi1> to vector<8x21xi1>
    %202 = arith.select %201, %197, %193 : vector<8x21xi1>, vector<8x21xf32>
    %c119_i32 = arith.constant 119 : i32
    %203 = tpu.dynamic_rotate %12 by %c119_i32 dim 1 : vector<8x128xf32>, i32 -> vector<8x128xf32>
    %204 = arith.subf %10, %203 : vector<8x128xf32>
    %205 = arith.mulf %204, %204 : vector<8x128xf32>
    %cst_42 = arith.constant dense<0.000000e+00> : vector<8x21xf32>
    %206 = tpu.matmul %205, %2, %cst_42 {dimension_numbers = #tpu.dot_dimension_numbers<[1], [0], [0], [1], [0, 0, 1, 1], [], []>} : vector<8x128xf32>, vector<128x21xf32>, vector<8x21xf32> -> vector<8x21xf32>
    %c19_i32 = arith.constant 19 : i32
    %207 = vector.broadcast %c19_i32 : i32 to vector<1x21xi32>
    %208 = arith.cmpi eq, %13, %207 : vector<1x21xi32>
    %209 = vector.shape_cast %208 : vector<1x21xi1> to vector<1x21xi1>
    %210 = vector.broadcast %209 : vector<1x21xi1> to vector<8x21xi1>
    %211 = arith.select %210, %206, %202 : vector<8x21xi1>, vector<8x21xf32>
    %c118_i32 = arith.constant 118 : i32
    %212 = tpu.dynamic_rotate %12 by %c118_i32 dim 1 : vector<8x128xf32>, i32 -> vector<8x128xf32>
    %213 = arith.subf %10, %212 : vector<8x128xf32>
    %214 = arith.mulf %213, %213 : vector<8x128xf32>
    %cst_43 = arith.constant dense<0.000000e+00> : vector<8x21xf32>
    %215 = tpu.matmul %214, %2, %cst_43 {dimension_numbers = #tpu.dot_dimension_numbers<[1], [0], [0], [1], [0, 0, 1, 1], [], []>} : vector<8x128xf32>, vector<128x21xf32>, vector<8x21xf32> -> vector<8x21xf32>
    %c20_i32 = arith.constant 20 : i32
    %216 = vector.broadcast %c20_i32 : i32 to vector<1x21xi32>
    %217 = arith.cmpi eq, %13, %216 : vector<1x21xi32>
    %218 = vector.shape_cast %217 : vector<1x21xi1> to vector<1x21xi1>
    %219 = vector.broadcast %218 : vector<1x21xi1> to vector<8x21xi1>
    %220 = arith.select %219, %215, %211 : vector<8x21xi1>, vector<8x21xf32>
    %221 = arith.addf %29, %31 : vector<8x21xf32>
    %222 = arith.subf %221, %220 : vector<8x21xf32>
    %cst_44 = arith.constant 5.000000e-01 : f32
    %223 = vector.broadcast %cst_44 : f32 to vector<8x21xf32>
    %224 = arith.mulf %223, %222 : vector<8x21xf32>
    %225 = arith.mulf %28, %30 : vector<8x21xf32>
    %226 = vector.broadcast %21 : vector<1x21xf32> to vector<8x21xf32>
    %227 = arith.mulf %225, %226 : vector<8x21xf32>
    %228 = arith.subf %224, %227 : vector<8x21xf32>
    %229 = arith.mulf %28, %28 : vector<8x21xf32>
    %230 = vector.broadcast %21 : vector<1x21xf32> to vector<8x21xf32>
    %231 = arith.mulf %229, %230 : vector<8x21xf32>
    %232 = arith.subf %29, %231 : vector<8x21xf32>
    %cst_45 = arith.constant 0.000000e+00 : f32
    %233 = vector.broadcast %cst_45 : f32 to vector<8x21xf32>
    %234 = arith.maximumf %232, %233 : vector<8x21xf32>
    %235 = arith.mulf %30, %30 : vector<8x21xf32>
    %236 = vector.broadcast %21 : vector<1x21xf32> to vector<8x21xf32>
    %237 = arith.mulf %235, %236 : vector<8x21xf32>
    %238 = arith.subf %31, %237 : vector<8x21xf32>
    %cst_46 = arith.constant 0.000000e+00 : f32
    %239 = vector.broadcast %cst_46 : f32 to vector<8x21xf32>
    %240 = arith.maximumf %238, %239 : vector<8x21xf32>
    %241 = arith.mulf %234, %240 : vector<8x21xf32>
    %cst_47 = arith.constant dense<0xFF800000> : vector<8xf32>
    %242 = vector.multi_reduction <maximumf>, %241, %cst_47 [1] : vector<8x21xf32> to vector<8xf32>
    %243 = vector.shape_cast %242 : vector<8xf32> to vector<8x1xf32>
    %cst_48 = arith.constant 9.99999996E-13 : f32
    %244 = vector.broadcast %cst_48 : f32 to vector<8x1xf32>
    %245 = arith.mulf %243, %244 : vector<8x1xf32>
    %cst_49 = arith.constant 1.000000e-30 : f32
    %246 = vector.broadcast %cst_49 : f32 to vector<8x1xf32>
    %247 = arith.addf %245, %246 : vector<8x1xf32>
    %248 = vector.broadcast %247 : vector<8x1xf32> to vector<8x21xf32>
    %249 = arith.addf %241, %248 : vector<8x21xf32>
    %250 = math.rsqrt %249 : vector<8x21xf32>
    %251 = arith.mulf %228, %250 : vector<8x21xf32>
    %cst_50 = arith.constant dense<0xFF800000> : vector<8xf32>
    %252 = vector.multi_reduction <maximumf>, %251, %cst_50 [1] : vector<8x21xf32> to vector<8xf32>
    %253 = vector.shape_cast %252 : vector<8xf32> to vector<8x1xf32>
    %254 = tpu.iota {dimensions = array<i32: 1>} : vector<8x21xi32>
    %255 = vector.broadcast %253 : vector<8x1xf32> to vector<8x21xf32>
    %256 = arith.cmpf oeq, %251, %255 : vector<8x21xf32>
    %c21_i32 = arith.constant 21 : i32
    %257 = vector.broadcast %c21_i32 : i32 to vector<8x21xi32>
    %258 = arith.select %256, %254, %257 : vector<8x21xi1>, vector<8x21xi32>
    %cst_51 = arith.constant dense<2147483647> : vector<8xi32>
    %259 = vector.multi_reduction <minsi>, %258, %cst_51 [1] : vector<8x21xi32> to vector<8xi32>
    %260 = vector.shape_cast %259 : vector<8xi32> to vector<8x1xi32>
    %261 = vector.broadcast %21 : vector<1x21xf32> to vector<8x21xf32>
    %262 = arith.mulf %220, %261 : vector<8x21xf32>
    %263 = vector.broadcast %260 : vector<8x1xi32> to vector<8x21xi32>
    %264 = arith.cmpi eq, %254, %263 : vector<8x21xi32>
    %cst_52 = arith.constant 0.000000e+00 : f32
    %265 = vector.broadcast %cst_52 : f32 to vector<8x21xf32>
    %266 = arith.select %264, %262, %265 : vector<8x21xi1>, vector<8x21xf32>
    %cst_53 = arith.constant dense<0.000000e+00> : vector<8xf32>
    %267 = vector.multi_reduction <add>, %266, %cst_53 [1] : vector<8x21xf32> to vector<8xf32>
    %268 = vector.shape_cast %267 : vector<8xf32> to vector<8x1xf32>
    %269 = tpu.iota {dimensions = array<i32: 0>} : vector<8x1xi32>
    %c8_i32_54 = arith.constant 8 : i32
    %270 = arith.muli %arg0, %c8_i32_54 : i32
    %271 = vector.broadcast %270 : i32 to vector<8x1xi32>
    %272 = arith.addi %269, %271 : vector<8x1xi32>
    %c4_i32_55 = arith.constant 4 : i32
    %273 = vector.broadcast %c4_i32_55 : i32 to vector<8x1xi32>
    %274 = arith.cmpi slt, %272, %273 : vector<8x1xi32>
    %cst_56 = arith.constant 0.000000e+00 : f32
    %275 = vector.broadcast %cst_56 : f32 to vector<8x1xf32>
    %276 = arith.select %274, %268, %275 : vector<8x1xi1>, vector<8x1xf32>
    %277 = vector.shape_cast %276 : vector<8x1xf32> to vector<8x1xf32>
    %278 = vector.broadcast %277 : vector<8x1xf32> to vector<8x128xf32>
    %c0_57 = arith.constant 0 : index
    %c0_58 = arith.constant 0 : index
    %279 = vector.load %arg5[%c0_57, %c0_58] : memref<8x128xf32, #tpu.memory_space<vmem>>, vector<8x128xf32>
    tpu.vector_store %arg5[%c0_57, %c0_58], %278 {strides = array<i32>} : memref<8x128xf32, #tpu.memory_space<vmem>>, vector<8x128xf32>,
    return
  }
  func.func @transform_0(%arg0: i32) -> (i32, i32) {
    %c0_i32 = arith.constant 0 : i32
    %c0_i32_0 = arith.constant 0 : i32
    return %arg0, %c0_i32 : i32, i32
  }
  func.func @transform_1(%arg0: i32) -> (i32, i32) {
    %c0_i32 = arith.constant 0 : i32
    %c0_i32_0 = arith.constant 0 : i32
    return %arg0, %c0_i32 : i32, i32
  }
  func.func @transform_2(%arg0: i32) -> (i32, i32) {
    %c0_i32 = arith.constant 0 : i32
    %c0_i32_0 = arith.constant 0 : i32
    %c0_i32_1 = arith.constant 0 : i32
    return %c0_i32, %c0_i32_0 : i32, i32
  }
  func.func @transform_3(%arg0: i32) -> (i32, i32) {
    %c0_i32 = arith.constant 0 : i32
    %c0_i32_0 = arith.constant 0 : i32
    %c0_i32_1 = arith.constant 0 : i32
    return %c0_i32, %c0_i32_0 : i32, i32
  }
  func.func @transform_4(%arg0: i32) -> (i32, i32) {
    %c0_i32 = arith.constant 0 : i32
    %c0_i32_0 = arith.constant 0 : i32
    return %arg0, %c0_i32 : i32, i32
  }
}

</mosaic_0001>

<llo_original>
// kernel: tpu_custom_call.1
$region0: #{tpu_custom_call.1}
  #allocation0 [shape = 'u32[]', space=smem, size = 0x4, offset = 0x4, fixed_abs, tag = 'smem constant byte address 0x4 - core index']
  #allocation1 [shape = 'u32[72,128]{1,0:T(1,128)}', space=vmem, size = 0x9000, scoped, tag = 'internal scratch']
  %s0 = inlined_call_operand.vmem [shape: f32[8,128], index: 0, kind: input, shape index: {}]
  %s1 = inlined_call_operand.vmem [shape: f32[8,128], index: 1, kind: input, shape index: {}]
  %s2 = inlined_call_operand.vmem [shape: f32[128,21], index: 2, kind: input, shape index: {}]
  %s3 = inlined_call_operand.vmem [shape: f32[128,21], index: 3, kind: input, shape index: {}]
  %s4 = inlined_call_operand.hbm [shape: f32[8,128], index: 4, kind: output, shape index: {}]
  %s5 = sld [smem:[#allocation0]]
  $region26: #{tpu_custom_call.1} parent=0
    _
  %s7 = ssub.s32 1, %s5
  %s8 = scalar_select 0, %s7, %s5
  $region1: #{tpu_custom_call.1} parent=0
    #allocation2 [shape = 'u8[4096]{0}', space=vmem, size = 0x1000, scoped, tag = 'output window, operand 0, single buffered']
    #allocation3 [shape = 's32[1]{0}', space=sflag, size = 0x4, scoped, tag = 'scoped memory for tpu_custom_call.1']
    %9 = vsyncpa [#allocation3], 0
    // Predicated region
    $region2: #{tpu_custom_call.1} parent=1 // pred_check
      _
    $region3: #{tpu_custom_call.1} parent=1 // pred_check_branch
      %11 = sbr.rel (0) target = $region5
    $region4: #{tpu_custom_call.1} parent=1 // pred_region
      _
    $region5: #{tpu_custom_call.1} parent=1 // pred_fallthru
      _
    // Predicated region
    $region6: #{tpu_custom_call.1} parent=1 // pred_check
      _
    $region7: #{tpu_custom_call.1} parent=1 // pred_check_branch
      %13 = sbr.rel (0) target = $region9
    $region8: #{tpu_custom_call.1} parent=1 // pred_region
      _
    $region9: #{tpu_custom_call.1} parent=1 // pred_fallthru
      _
    // Predicated region
    $region10: #{tpu_custom_call.1} parent=1 // pred_check
      _
    $region11: #{tpu_custom_call.1} parent=1 // pred_check_branch
      %15 = sbr.rel (0) target = $region13
    $region12: #{tpu_custom_call.1} parent=1 // pred_region
      _
    $region13: #{tpu_custom_call.1} parent=1 // pred_fallthru
      _
    // Predicated region
    $region14: #{tpu_custom_call.1} parent=1 // pred_check
      _
    $region15: #{tpu_custom_call.1} parent=1 // pred_check_branch
      %17 = sbr.rel (0) target = $region17
    $region16: #{tpu_custom_call.1} parent=1 // pred_region
      _
    $region17: #{tpu_custom_call.1} parent=1 // pred_fallthru
      _
    %v18 = vld [vmem:[%s0] sm:$0xff]
    %v19 = vld [vmem:[%s1] sm:$0xff]
    %v20 = vld [vmem:[%s2] sm:$0xff]
    %v21 = vld [vmem:[%s2 + $0x8] sm:$0xff]
    %v22 = vld [vmem:[%s2 + $0x10] sm:$0xff]
    %v23 = vld [vmem:[%s2 + $0x18] sm:$0xff]
    %v24 = vld [vmem:[%s2 + $0x20] sm:$0xff]
    %v25 = vld [vmem:[%s2 + $0x28] sm:$0xff]
    %v26 = vld [vmem:[%s2 + $0x30] sm:$0xff]
    %v27 = vld [vmem:[%s2 + $0x38] sm:$0xff]
    %v28 = vld [vmem:[%s2 + $0x40] sm:$0xff]
    %v29 = vld [vmem:[%s2 + $0x48] sm:$0xff]
    %v30 = vld [vmem:[%s2 + $0x50] sm:$0xff]
    %v31 = vld [vmem:[%s2 + $0x58] sm:$0xff]
    %v32 = vld [vmem:[%s2 + $0x60] sm:$0xff]
    %v33 = vld [vmem:[%s2 + $0x68] sm:$0xff]
    %v34 = vld [vmem:[%s2 + $0x70] sm:$0xff]
    %v35 = vld [vmem:[%s2 + $0x78] sm:$0xff]
    %v36 = vld [vmem:[%s3] sm:$0xff]
    %v37 = vld [vmem:[%s3 + $0x8] sm:$0xff]
    %v38 = vld [vmem:[%s3 + $0x10] sm:$0xff]
    %v39 = vld [vmem:[%s3 + $0x18] sm:$0xff]
    %v40 = vld [vmem:[%s3 + $0x20] sm:$0xff]
    %v41 = vld [vmem:[%s3 + $0x28] sm:$0xff]
    %v42 = vld [vmem:[%s3 + $0x30] sm:$0xff]
    %v43 = vld [vmem:[%s3 + $0x38] sm:$0xff]
    %v44 = vld [vmem:[%s3 + $0x40] sm:$0xff]
    %v45 = vld [vmem:[%s3 + $0x48] sm:$0xff]
    %v46 = vld [vmem:[%s3 + $0x50] sm:$0xff]
    %v47 = vld [vmem:[%s3 + $0x58] sm:$0xff]
    %v48 = vld [vmem:[%s3 + $0x60] sm:$0xff]
    %v49 = vld [vmem:[%s3 + $0x68] sm:$0xff]
    %v50 = vld [vmem:[%s3 + $0x70] sm:$0xff]
    %v51 = vld [vmem:[%s3 + $0x78] sm:$0xff]
    %v52 = vadd.f32 %v18, %v19
    %53 = vadd.xlane.f32.xlu0 %v52
    %v54 = vpop.xlane.xlu0 %53
    %v55 = vmul.f32 %v54, 0.0078125
    %v56 = vsub.f32 %v18, %v55
    %v57 = vsub.f32 %v19, %v55
    %v58 = vlaneseq
    %v59 = vand.u32 %v58, 127
    %v60 = vsub.s32 %v59, 10
    %vm61 = vcmp.lt.s32.totalorder %v60, 0
    %v62 = vsub.s32 0, %v60
    %v63 = vsel %vm61, %v62, %v60
    %v64 = vsub.s32 64, %v63
    %v65 = vcvt.s32.f32 %v64
    %v66 = vrcp.pop %v65
    %v67 = vmul.f32 %v65, %v66
    %v68 = vsub.f32 1.0, %v67
    %v69 = vmul.f32 %v66, %v68
    %v70 = vadd.f32 %v66, %v69
    %vm71 = vweird.f32 %v65
    %vm72 = vweird.f32 %v66
    %vm73 = vmor %vm71, %vm72
    %v74 = vsel %vm73, %v66, %v70
    %v75 = vand.u32 2147483647, %v65
    %vm76 = vcmp.eq.f32.partialorder %v75, 8.507059e+37
    %v77 = vand.u32 %v65, 2147483648
    %v78 = vor.u32 1.1754944e-38, %v77
    %v79 = vsel %vm76, %v78, %v74
    %v80 = vmul.f32 1.0, %v79
    %v81 = vmul.f32 %v56, %v56
    %82 = vmatpush.msra.mxu0 %v35
    %83 = vmatpush.msra.mxu0 %v34
    %84 = vmatpush.msra.mxu0 %v33
    %85 = vmatpush.msra.mxu0 %v32
    %86 = vmatpush.msra.mxu0 %v31
    %87 = vmatpush.msra.mxu0 %v30
    %88 = vmatpush.msra.mxu0 %v29
    %89 = vmatpush.msra.mxu0 %v28
    %90 = vmatpush.msra.mxu0 %v27
    %91 = vmatpush.msra.mxu0 %v26
    %92 = vmatpush.msra.mxu0 %v25
    %93 = vmatpush.msra.mxu0 %v24
    %94 = vmatpush.msra.mxu0 %v23
    %95 = vmatpush.msra.mxu0 %v22
    %96 = vmatpush.msra.mxu0 %v21
    %97 = vmatpush.msra.mxu0 %v20
    %98 = vmatmul.f32.gmra.mxu0 %v56
    %v99 = vpop.f32.mrf.mxu0
    %v100 = vadd.f32 0.0, %v99
    %101 = vmatmul.f32.gmra.mxu0 %v81
    %v102 = vpop.f32.mrf.mxu0
    %v103 = vadd.f32 0.0, %v102
    %104 = vdwg.mxu0
    %v105 = vmul.f32 %v57, %v57
    %106 = vmatpush.msra.mxu0 %v51
    %107 = vmatpush.msra.mxu0 %v50
    %108 = vmatpush.msra.mxu0 %v49
    %109 = vmatpush.msra.mxu0 %v48
    %110 = vmatpush.msra.mxu0 %v47
    %111 = vmatpush.msra.mxu0 %v46
    %112 = vmatpush.msra.mxu0 %v45
    %113 = vmatpush.msra.mxu0 %v44
    %114 = vmatpush.msra.mxu0 %v43
    %115 = vmatpush.msra.mxu0 %v42
    %116 = vmatpush.msra.mxu0 %v41
    %117 = vmatpush.msra.mxu0 %v40
    %118 = vmatpush.msra.mxu0 %v39
    %119 = vmatpush.msra.mxu0 %v38
    %120 = vmatpush.msra.mxu0 %v37
    %121 = vmatpush.msra.mxu0 %v36
    %122 = vmatmul.f32.gmra.mxu0 %v57
    %v123 = vpop.f32.mrf.mxu0
    %v124 = vadd.f32 0.0, %v123
    %125 = vmatmul.f32.gmra.mxu0 %v105
    %v126 = vpop.f32.mrf.mxu0
    %v127 = vadd.f32 0.0, %v126
    %128 = vdwg.mxu0
    %129 = vrot.lane.b32.xlu0 %v57, 10
    %v130 = vpop.permute.xlu0 %129
    %v131 = vsub.f32 %v56, %v130
    %v132 = vmul.f32 %v131, %v131
    %133 = vmatpush.msra.mxu0 %v35
    %134 = vmatpush.msra.mxu0 %v34
    %135 = vmatpush.msra.mxu0 %v33
    %136 = vmatpush.msra.mxu0 %v32
    %137 = vmatpush.msra.mxu0 %v31
    %138 = vmatpush.msra.mxu0 %v30
    %139 = vmatpush.msra.mxu0 %v29
    %140 = vmatpush.msra.mxu0 %v28
    %141 = vmatpush.msra.mxu0 %v27
    %142 = vmatpush.msra.mxu0 %v26
    %143 = vmatpush.msra.mxu0 %v25
    %144 = vmatpush.msra.mxu0 %v24
    %145 = vmatpush.msra.mxu0 %v23
    %146 = vmatpush.msra.mxu0 %v22
    %147 = vmatpush.msra.mxu0 %v21
    %148 = vmatpush.msra.mxu0 %v20
    %149 = vmatmul.f32.gmra.mxu0 %v132
    %v150 = vpop.f32.mrf.mxu0
    %v151 = vadd.f32 0.0, %v150
    %152 = vdwg.mxu0
    %vm153 = vcmp.eq.s32.totalorder %v59, 0
    %v154 = vsel %vm153, 1, 0
    %vm155 = vcmp.eq.s32.totalorder %v154, 1
    %v156 = vsel %vm155, %v151, 0.0
    %157 = vrot.lane.b32.xlu0 %v57, 9
    %v158 = vpop.permute.xlu0 %157
    %v159 = vsub.f32 %v56, %v158
    %v160 = vmul.f32 %v159, %v159
    %161 = vmatpush.msra.mxu0 %v35
    %162 = vmatpush.msra.mxu0 %v34
    %163 = vmatpush.msra.mxu0 %v33
    %164 = vmatpush.msra.mxu0 %v32
    %165 = vmatpush.msra.mxu0 %v31
    %166 = vmatpush.msra.mxu0 %v30
    %167 = vmatpush.msra.mxu0 %v29
    %168 = vmatpush.msra.mxu0 %v28
    %169 = vmatpush.msra.mxu0 %v27
    %170 = vmatpush.msra.mxu0 %v26
    %171 = vmatpush.msra.mxu0 %v25
    %172 = vmatpush.msra.mxu0 %v24
    %173 = vmatpush.msra.mxu0 %v23
    %174 = vmatpush.msra.mxu0 %v22
    %175 = vmatpush.msra.mxu0 %v21
    %176 = vmatpush.msra.mxu0 %v20
    %177 = vmatmul.f32.gmra.mxu0 %v160
    %v178 = vpop.f32.mrf.mxu0
    %v179 = vadd.f32 0.0, %v178
    %180 = vdwg.mxu0
    %vm181 = vcmp.eq.s32.totalorder %v59, 1
    %v182 = vsel %vm181, 1, 0
    %vm183 = vcmp.eq.s32.totalorder %v182, 1
    %v184 = vsel %vm183, %v179, %v156
    %185 = vrot.lane.b32.xlu0 %v57, 8
    %v186 = vpop.permute.xlu0 %185
    %v187 = vsub.f32 %v56, %v186
    %v188 = vmul.f32 %v187, %v187
    %189 = vmatpush.msra.mxu0 %v35
    %190 = vmatpush.msra.mxu0 %v34
    %191 = vmatpush.msra.mxu0 %v33
    %192 = vmatpush.msra.mxu0 %v32
    %193 = vmatpush.msra.mxu0 %v31
    %194 = vmatpush.msra.mxu0 %v30
    %195 = vmatpush.msra.mxu0 %v29
    %196 = vmatpush.msra.mxu0 %v28
    %197 = vmatpush.msra.mxu0 %v27
    %198 = vmatpush.msra.mxu0 %v26
    %199 = vmatpush.msra.mxu0 %v25
    %200 = vmatpush.msra.mxu0 %v24
    %201 = vmatpush.msra.mxu0 %v23
    %202 = vmatpush.msra.mxu0 %v22
    %203 = vmatpush.msra.mxu0 %v21
    %204 = vmatpush.msra.mxu0 %v20
    %205 = vmatmul.f32.gmra.mxu0 %v188
    %v206 = vpop.f32.mrf.mxu0
    %v207 = vadd.f32 0.0, %v206
    %208 = vdwg.mxu0
    %vm209 = vcmp.eq.s32.totalorder %v59, 2
    %v210 = vsel %vm209, 1, 0
    %vm211 = vcmp.eq.s32.totalorder %v210, 1
    %v212 = vsel %vm211, %v207, %v184
    %213 = vrot.lane.b32.xlu0 %v57, 7
    %v214 = vpop.permute.xlu0 %213
    %v215 = vsub.f32 %v56, %v214
    %v216 = vmul.f32 %v215, %v215
    %217 = vmatpush.msra.mxu0 %v35
    %218 = vmatpush.msra.mxu0 %v34
    %219 = vmatpush.msra.mxu0 %v33
    %220 = vmatpush.msra.mxu0 %v32
    %221 = vmatpush.msra.mxu0 %v31
    %222 = vmatpush.msra.mxu0 %v30
    %223 = vmatpush.msra.mxu0 %v29
    %224 = vmatpush.msra.mxu0 %v28
    %225 = vmatpush.msra.mxu0 %v27
    %226 = vmatpush.msra.mxu0 %v26
    %227 = vmatpush.msra.mxu0 %v25
    %228 = vmatpush.msra.mxu0 %v24
    %229 = vmatpush.msra.mxu0 %v23
    %230 = vmatpush.msra.mxu0 %v22
    %231 = vmatpush.msra.mxu0 %v21
    %232 = vmatpush.msra.mxu0 %v20
    %233 = vmatmul.f32.gmra.mxu0 %v216
    %v234 = vpop.f32.mrf.mxu0
    %v235 = vadd.f32 0.0, %v234
    %236 = vdwg.mxu0
    %vm237 = vcmp.eq.s32.totalorder %v59, 3
    %v238 = vsel %vm237, 1, 0
    %vm239 = vcmp.eq.s32.totalorder %v238, 1
    %v240 = vsel %vm239, %v235, %v212
    %241 = vrot.lane.b32.xlu0 %v57, 6
    %v242 = vpop.permute.xlu0 %241
    %v243 = vsub.f32 %v56, %v242
    %v244 = vmul.f32 %v243, %v243
    %245 = vmatpush.msra.mxu0 %v35
    %246 = vmatpush.msra.mxu0 %v34
    %247 = vmatpush.msra.mxu0 %v33
    %248 = vmatpush.msra.mxu0 %v32
    %249 = vmatpush.msra.mxu0 %v31
    %250 = vmatpush.msra.mxu0 %v30
    %251 = vmatpush.msra.mxu0 %v29
    %252 = vmatpush.msra.mxu0 %v28
    %253 = vmatpush.msra.mxu0 %v27
    %254 = vmatpush.msra.mxu0 %v26
    %255 = vmatpush.msra.mxu0 %v25
    %256 = vmatpush.msra.mxu0 %v24
    %257 = vmatpush.msra.mxu0 %v23
    %258 = vmatpush.msra.mxu0 %v22
    %259 = vmatpush.msra.mxu0 %v21
    %260 = vmatpush.msra.mxu0 %v20
    %261 = vmatmul.f32.gmra.mxu0 %v244
    %v262 = vpop.f32.mrf.mxu0
    %v263 = vadd.f32 0.0, %v262
    %264 = vdwg.mxu0
    %vm265 = vcmp.eq.s32.totalorder %v59, 4
    %v266 = vsel %vm265, 1, 0
    %vm267 = vcmp.eq.s32.totalorder %v266, 1
    %v268 = vsel %vm267, %v263, %v240
    %269 = vrot.lane.b32.xlu0 %v57, 5
    %v270 = vpop.permute.xlu0 %269
    %v271 = vsub.f32 %v56, %v270
    %v272 = vmul.f32 %v271, %v271
    %273 = vmatpush.msra.mxu0 %v35
    %274 = vmatpush.msra.mxu0 %v34
    %275 = vmatpush.msra.mxu0 %v33
    %276 = vmatpush.msra.mxu0 %v32
    %277 = vmatpush.msra.mxu0 %v31
    %278 = vmatpush.msra.mxu0 %v30
    %279 = vmatpush.msra.mxu0 %v29
    %280 = vmatpush.msra.mxu0 %v28
    %281 = vmatpush.msra.mxu0 %v27
    %282 = vmatpush.msra.mxu0 %v26
    %283 = vmatpush.msra.mxu0 %v25
    %284 = vmatpush.msra.mxu0 %v24
    %285 = vmatpush.msra.mxu0 %v23
    %286 = vmatpush.msra.mxu0 %v22
    %287 = vmatpush.msra.mxu0 %v21
    %288 = vmatpush.msra.mxu0 %v20
    %289 = vmatmul.f32.gmra.mxu0 %v272
    %v290 = vpop.f32.mrf.mxu0
    %v291 = vadd.f32 0.0, %v290
    %292 = vdwg.mxu0
    %vm293 = vcmp.eq.s32.totalorder %v59, 5
    %v294 = vsel %vm293, 1, 0
    %vm295 = vcmp.eq.s32.totalorder %v294, 1
    %v296 = vsel %vm295, %v291, %v268
    %297 = vrot.lane.b32.xlu0 %v57, 4
    %v298 = vpop.permute.xlu0 %297
    %v299 = vsub.f32 %v56, %v298
    %v300 = vmul.f32 %v299, %v299
    %301 = vmatpush.msra.mxu0 %v35
    %302 = vmatpush.msra.mxu0 %v34
    %303 = vmatpush.msra.mxu0 %v33
    %304 = vmatpush.msra.mxu0 %v32
    %305 = vmatpush.msra.mxu0 %v31
    %306 = vmatpush.msra.mxu0 %v30
    %307 = vmatpush.msra.mxu0 %v29
    %308 = vmatpush.msra.mxu0 %v28
    %309 = vmatpush.msra.mxu0 %v27
    %310 = vmatpush.msra.mxu0 %v26
    %311 = vmatpush.msra.mxu0 %v25
    %312 = vmatpush.msra.mxu0 %v24
    %313 = vmatpush.msra.mxu0 %v23
    %314 = vmatpush.msra.mxu0 %v22
    %315 = vmatpush.msra.mxu0 %v21
    %316 = vmatpush.msra.mxu0 %v20
    %317 = vmatmul.f32.gmra.mxu0 %v300
    %v318 = vpop.f32.mrf.mxu0
    %v319 = vadd.f32 0.0, %v318
    %320 = vdwg.mxu0
    %vm321 = vcmp.eq.s32.totalorder %v59, 6
    %v322 = vsel %vm321, 1, 0
    %vm323 = vcmp.eq.s32.totalorder %v322, 1
    %v324 = vsel %vm323, %v319, %v296
    %325 = vrot.lane.b32.xlu0 %v57, 3
    %v326 = vpop.permute.xlu0 %325
    %v327 = vsub.f32 %v56, %v326
    %v328 = vmul.f32 %v327, %v327
    %329 = vmatpush.msra.mxu0 %v35
    %330 = vmatpush.msra.mxu0 %v34
    %331 = vmatpush.msra.mxu0 %v33
    %332 = vmatpush.msra.mxu0 %v32
    %333 = vmatpush.msra.mxu0 %v31
    %334 = vmatpush.msra.mxu0 %v30
    %335 = vmatpush.msra.mxu0 %v29
    %336 = vmatpush.msra.mxu0 %v28
    %337 = vmatpush.msra.mxu0 %v27
    %338 = vmatpush.msra.mxu0 %v26
    %339 = vmatpush.msra.mxu0 %v25
    %340 = vmatpush.msra.mxu0 %v24
    %341 = vmatpush.msra.mxu0 %v23
    %342 = vmatpush.msra.mxu0 %v22
    %343 = vmatpush.msra.mxu0 %v21
    %344 = vmatpush.msra.mxu0 %v20
    %345 = vmatmul.f32.gmra.mxu0 %v328
    %v346 = vpop.f32.mrf.mxu0
    %v347 = vadd.f32 0.0, %v346
    %348 = vdwg.mxu0
    %vm349 = vcmp.eq.s32.totalorder %v59, 7
    %v350 = vsel %vm349, 1, 0
    %vm351 = vcmp.eq.s32.totalorder %v350, 1
    %v352 = vsel %vm351, %v347, %v324
    %353 = vrot.lane.b32.xlu0 %v57, 2
    %v354 = vpop.permute.xlu0 %353
    %v355 = vsub.f32 %v56, %v354
    %v356 = vmul.f32 %v355, %v355
    %357 = vmatpush.msra.mxu0 %v35
    %358 = vmatpush.msra.mxu0 %v34
    %359 = vmatpush.msra.mxu0 %v33
    %360 = vmatpush.msra.mxu0 %v32
    %361 = vmatpush.msra.mxu0 %v31
    %362 = vmatpush.msra.mxu0 %v30
    %363 = vmatpush.msra.mxu0 %v29
    %364 = vmatpush.msra.mxu0 %v28
    %365 = vmatpush.msra.mxu0 %v27
    %366 = vmatpush.msra.mxu0 %v26
    %367 = vmatpush.msra.mxu0 %v25
    %368 = vmatpush.msra.mxu0 %v24
    %369 = vmatpush.msra.mxu0 %v23
    %370 = vmatpush.msra.mxu0 %v22
    %371 = vmatpush.msra.mxu0 %v21
    %372 = vmatpush.msra.mxu0 %v20
    %373 = vmatmul.f32.gmra.mxu0 %v356
    %v374 = vpop.f32.mrf.mxu0
    %v375 = vadd.f32 0.0, %v374
    %376 = vdwg.mxu0
    %vm377 = vcmp.eq.s32.totalorder %v59, 8
    %v378 = vsel %vm377, 1, 0
    %vm379 = vcmp.eq.s32.totalorder %v378, 1
    %v380 = vsel %vm379, %v375, %v352
    %381 = vrot.lane.b32.xlu0 %v57, 1
    %v382 = vpop.permute.xlu0 %381
    %v383 = vsub.f32 %v56, %v382
    %v384 = vmul.f32 %v383, %v383
    %385 = vmatpush.msra.mxu0 %v35
    %386 = vmatpush.msra.mxu0 %v34
    %387 = vmatpush.msra.mxu0 %v33
    %388 = vmatpush.msra.mxu0 %v32
    %389 = vmatpush.msra.mxu0 %v31
    %390 = vmatpush.msra.mxu0 %v30
    %391 = vmatpush.msra.mxu0 %v29
    %392 = vmatpush.msra.mxu0 %v28
    %393 = vmatpush.msra.mxu0 %v27
    %394 = vmatpush.msra.mxu0 %v26
    %395 = vmatpush.msra.mxu0 %v25
    %396 = vmatpush.msra.mxu0 %v24
    %397 = vmatpush.msra.mxu0 %v23
    %398 = vmatpush.msra.mxu0 %v22
    %399 = vmatpush.msra.mxu0 %v21
    %400 = vmatpush.msra.mxu0 %v20
    %401 = vmatmul.f32.gmra.mxu0 %v384
    %v402 = vpop.f32.mrf.mxu0
    %v403 = vadd.f32 0.0, %v402
    %404 = vdwg.mxu0
    %vm405 = vcmp.eq.s32.totalorder %v59, 9
    %v406 = vsel %vm405, 1, 0
    %vm407 = vcmp.eq.s32.totalorder %v406, 1
    %v408 = vsel %vm407, %v403, %v380
    %v409 = vsub.f32 %v56, %v57
    %v410 = vmul.f32 %v409, %v409
    %411 = vmatpush.msra.mxu0 %v35
    %412 = vmatpush.msra.mxu0 %v34
    %413 = vmatpush.msra.mxu0 %v33
    %414 = vmatpush.msra.mxu0 %v32
    %415 = vmatpush.msra.mxu0 %v31
    %416 = vmatpush.msra.mxu0 %v30
    %417 = vmatpush.msra.mxu0 %v29
    %418 = vmatpush.msra.mxu0 %v28
    %419 = vmatpush.msra.mxu0 %v27
    %420 = vmatpush.msra.mxu0 %v26
    %421 = vmatpush.msra.mxu0 %v25
    %422 = vmatpush.msra.mxu0 %v24
    %423 = vmatpush.msra.mxu0 %v23
    %424 = vmatpush.msra.mxu0 %v22
    %425 = vmatpush.msra.mxu0 %v21
    %426 = vmatpush.msra.mxu0 %v20
    %427 = vmatmul.f32.gmra.mxu0 %v410
    %v428 = vpop.f32.mrf.mxu0
    %v429 = vadd.f32 0.0, %v428
    %430 = vdwg.mxu0
    %vm431 = vcmp.eq.s32.totalorder %v59, 10
    %v432 = vsel %vm431, 1, 0
    %vm433 = vcmp.eq.s32.totalorder %v432, 1
    %v434 = vsel %vm433, %v429, %v408
    %435 = vrot.lane.b32.xlu0 %v57, 127
    %v436 = vpop.permute.xlu0 %435
    %v437 = vsub.f32 %v56, %v436
    %v438 = vmul.f32 %v437, %v437
    %439 = vmatpush.msra.mxu0 %v35
    %440 = vmatpush.msra.mxu0 %v34
    %441 = vmatpush.msra.mxu0 %v33
    %442 = vmatpush.msra.mxu0 %v32
    %443 = vmatpush.msra.mxu0 %v31
    %444 = vmatpush.msra.mxu0 %v30
    %445 = vmatpush.msra.mxu0 %v29
    %446 = vmatpush.msra.mxu0 %v28
    %447 = vmatpush.msra.mxu0 %v27
    %448 = vmatpush.msra.mxu0 %v26
    %449 = vmatpush.msra.mxu0 %v25
    %450 = vmatpush.msra.mxu0 %v24
    %451 = vmatpush.msra.mxu0 %v23
    %452 = vmatpush.msra.mxu0 %v22
    %453 = vmatpush.msra.mxu0 %v21
    %454 = vmatpush.msra.mxu0 %v20
    %455 = vmatmul.f32.gmra.mxu0 %v438
    %v456 = vpop.f32.mrf.mxu0
    %v457 = vadd.f32 0.0, %v456
    %458 = vdwg.mxu0
    %vm459 = vcmp.eq.s32.totalorder %v59, 11
    %v460 = vsel %vm459, 1, 0
    %vm461 = vcmp.eq.s32.totalorder %v460, 1
    %v462 = vsel %vm461, %v457, %v434
    %463 = vrot.lane.b32.xlu0 %v57, 126
    %v464 = vpop.permute.xlu0 %463
    %v465 = vsub.f32 %v56, %v464
    %v466 = vmul.f32 %v465, %v465
    %467 = vmatpush.msra.mxu0 %v35
    %468 = vmatpush.msra.mxu0 %v34
    %469 = vmatpush.msra.mxu0 %v33
    %470 = vmatpush.msra.mxu0 %v32
    %471 = vmatpush.msra.mxu0 %v31
    %472 = vmatpush.msra.mxu0 %v30
    %473 = vmatpush.msra.mxu0 %v29
    %474 = vmatpush.msra.mxu0 %v28
    %475 = vmatpush.msra.mxu0 %v27
    %476 = vmatpush.msra.mxu0 %v26
    %477 = vmatpush.msra.mxu0 %v25
    %478 = vmatpush.msra.mxu0 %v24
    %479 = vmatpush.msra.mxu0 %v23
    %480 = vmatpush.msra.mxu0 %v22
    %481 = vmatpush.msra.mxu0 %v21
    %482 = vmatpush.msra.mxu0 %v20
    %483 = vmatmul.f32.gmra.mxu0 %v466
    %v484 = vpop.f32.mrf.mxu0
    %v485 = vadd.f32 0.0, %v484
    %486 = vdwg.mxu0
    %vm487 = vcmp.eq.s32.totalorder %v59, 12
    %v488 = vsel %vm487, 1, 0
    %vm489 = vcmp.eq.s32.totalorder %v488, 1
    %v490 = vsel %vm489, %v485, %v462
    %491 = vrot.lane.b32.xlu0 %v57, 125
    %v492 = vpop.permute.xlu0 %491
    %v493 = vsub.f32 %v56, %v492
    %v494 = vmul.f32 %v493, %v493
    %495 = vmatpush.msra.mxu0 %v35
    %496 = vmatpush.msra.mxu0 %v34
    %497 = vmatpush.msra.mxu0 %v33
    %498 = vmatpush.msra.mxu0 %v32
    %499 = vmatpush.msra.mxu0 %v31
    %500 = vmatpush.msra.mxu0 %v30
    %501 = vmatpush.msra.mxu0 %v29
    %502 = vmatpush.msra.mxu0 %v28
    %503 = vmatpush.msra.mxu0 %v27
    %504 = vmatpush.msra.mxu0 %v26
    %505 = vmatpush.msra.mxu0 %v25
    %506 = vmatpush.msra.mxu0 %v24
    %507 = vmatpush.msra.mxu0 %v23
    %508 = vmatpush.msra.mxu0 %v22
    %509 = vmatpush.msra.mxu0 %v21
    %510 = vmatpush.msra.mxu0 %v20
    %511 = vmatmul.f32.gmra.mxu0 %v494
    %v512 = vpop.f32.mrf.mxu0
    %v513 = vadd.f32 0.0, %v512
    %514 = vdwg.mxu0
    %vm515 = vcmp.eq.s32.totalorder %v59, 13
    %v516 = vsel %vm515, 1, 0
    %vm517 = vcmp.eq.s32.totalorder %v516, 1
    %v518 = vsel %vm517, %v513, %v490
    %519 = vrot.lane.b32.xlu0 %v57, 124
    %v520 = vpop.permute.xlu0 %519
    %v521 = vsub.f32 %v56, %v520
    %v522 = vmul.f32 %v521, %v521
    %523 = vmatpush.msra.mxu0 %v35
    %524 = vmatpush.msra.mxu0 %v34
    %525 = vmatpush.msra.mxu0 %v33
    %526 = vmatpush.msra.mxu0 %v32
    %527 = vmatpush.msra.mxu0 %v31
    %528 = vmatpush.msra.mxu0 %v30
    %529 = vmatpush.msra.mxu0 %v29
    %530 = vmatpush.msra.mxu0 %v28
    %531 = vmatpush.msra.mxu0 %v27
    %532 = vmatpush.msra.mxu0 %v26
    %533 = vmatpush.msra.mxu0 %v25
    %534 = vmatpush.msra.mxu0 %v24
    %535 = vmatpush.msra.mxu0 %v23
    %536 = vmatpush.msra.mxu0 %v22
    %537 = vmatpush.msra.mxu0 %v21
    %538 = vmatpush.msra.mxu0 %v20
    %539 = vmatmul.f32.gmra.mxu0 %v522
    %v540 = vpop.f32.mrf.mxu0
    %v541 = vadd.f32 0.0, %v540
    %542 = vdwg.mxu0
    %vm543 = vcmp.eq.s32.totalorder %v59, 14
    %v544 = vsel %vm543, 1, 0
    %vm545 = vcmp.eq.s32.totalorder %v544, 1
    %v546 = vsel %vm545, %v541, %v518
    %547 = vrot.lane.b32.xlu0 %v57, 123
    %v548 = vpop.permute.xlu0 %547
    %v549 = vsub.f32 %v56, %v548
    %v550 = vmul.f32 %v549, %v549
    %551 = vmatpush.msra.mxu0 %v35
    %552 = vmatpush.msra.mxu0 %v34
    %553 = vmatpush.msra.mxu0 %v33
    %554 = vmatpush.msra.mxu0 %v32
    %555 = vmatpush.msra.mxu0 %v31
    %556 = vmatpush.msra.mxu0 %v30
    %557 = vmatpush.msra.mxu0 %v29
    %558 = vmatpush.msra.mxu0 %v28
    %559 = vmatpush.msra.mxu0 %v27
    %560 = vmatpush.msra.mxu0 %v26
    %561 = vmatpush.msra.mxu0 %v25
    %562 = vmatpush.msra.mxu0 %v24
    %563 = vmatpush.msra.mxu0 %v23
    %564 = vmatpush.msra.mxu0 %v22
    %565 = vmatpush.msra.mxu0 %v21
    %566 = vmatpush.msra.mxu0 %v20
    %567 = vmatmul.f32.gmra.mxu0 %v550
    %v568 = vpop.f32.mrf.mxu0
    %v569 = vadd.f32 0.0, %v568
    %570 = vdwg.mxu0
    %vm571 = vcmp.eq.s32.totalorder %v59, 15
    %v572 = vsel %vm571, 1, 0
    %vm573 = vcmp.eq.s32.totalorder %v572, 1
    %v574 = vsel %vm573, %v569, %v546
    %575 = vrot.lane.b32.xlu0 %v57, 122
    %v576 = vpop.permute.xlu0 %575
    %v577 = vsub.f32 %v56, %v576
    %v578 = vmul.f32 %v577, %v577
    %579 = vmatpush.msra.mxu0 %v35
    %580 = vmatpush.msra.mxu0 %v34
    %581 = vmatpush.msra.mxu0 %v33
    %582 = vmatpush.msra.mxu0 %v32
    %583 = vmatpush.msra.mxu0 %v31
    %584 = vmatpush.msra.mxu0 %v30
    %585 = vmatpush.msra.mxu0 %v29
    %586 = vmatpush.msra.mxu0 %v28
    %587 = vmatpush.msra.mxu0 %v27
    %588 = vmatpush.msra.mxu0 %v26
    %589 = vmatpush.msra.mxu0 %v25
    %590 = vmatpush.msra.mxu0 %v24
    %591 = vmatpush.msra.mxu0 %v23
    %592 = vmatpush.msra.mxu0 %v22
    %593 = vmatpush.msra.mxu0 %v21
    %594 = vmatpush.msra.mxu0 %v20
    %595 = vmatmul.f32.gmra.mxu0 %v578
    %v596 = vpop.f32.mrf.mxu0
    %v597 = vadd.f32 0.0, %v596
    %598 = vdwg.mxu0
    %vm599 = vcmp.eq.s32.totalorder %v59, 16
    %v600 = vsel %vm599, 1, 0
    %vm601 = vcmp.eq.s32.totalorder %v600, 1
    %v602 = vsel %vm601, %v597, %v574
    %603 = vrot.lane.b32.xlu0 %v57, 121
    %v604 = vpop.permute.xlu0 %603
    %v605 = vsub.f32 %v56, %v604
    %v606 = vmul.f32 %v605, %v605
    %607 = vmatpush.msra.mxu0 %v35
    %608 = vmatpush.msra.mxu0 %v34
    %609 = vmatpush.msra.mxu0 %v33
    %610 = vmatpush.msra.mxu0 %v32
    %611 = vmatpush.msra.mxu0 %v31
    %612 = vmatpush.msra.mxu0 %v30
    %613 = vmatpush.msra.mxu0 %v29
    %614 = vmatpush.msra.mxu0 %v28
    %615 = vmatpush.msra.mxu0 %v27
    %616 = vmatpush.msra.mxu0 %v26
    %617 = vmatpush.msra.mxu0 %v25
    %618 = vmatpush.msra.mxu0 %v24
    %619 = vmatpush.msra.mxu0 %v23
    %620 = vmatpush.msra.mxu0 %v22
    %621 = vmatpush.msra.mxu0 %v21
    %622 = vmatpush.msra.mxu0 %v20
    %623 = vmatmul.f32.gmra.mxu0 %v606
    %v624 = vpop.f32.mrf.mxu0
    %v625 = vadd.f32 0.0, %v624
    %626 = vdwg.mxu0
    %vm627 = vcmp.eq.s32.totalorder %v59, 17
    %v628 = vsel %vm627, 1, 0
    %vm629 = vcmp.eq.s32.totalorder %v628, 1
    %v630 = vsel %vm629, %v625, %v602
    %631 = vrot.lane.b32.xlu0 %v57, 120
    %v632 = vpop.permute.xlu0 %631
    %v633 = vsub.f32 %v56, %v632
    %v634 = vmul.f32 %v633, %v633
    %635 = vmatpush.msra.mxu0 %v35
    %636 = vmatpush.msra.mxu0 %v34
    %637 = vmatpush.msra.mxu0 %v33
    %638 = vmatpush.msra.mxu0 %v32
    %639 = vmatpush.msra.mxu0 %v31
    %640 = vmatpush.msra.mxu0 %v30
    %641 = vmatpush.msra.mxu0 %v29
    %642 = vmatpush.msra.mxu0 %v28
    %643 = vmatpush.msra.mxu0 %v27
    %644 = vmatpush.msra.mxu0 %v26
    %645 = vmatpush.msra.mxu0 %v25
    %646 = vmatpush.msra.mxu0 %v24
    %647 = vmatpush.msra.mxu0 %v23
    %648 = vmatpush.msra.mxu0 %v22
    %649 = vmatpush.msra.mxu0 %v21
    %650 = vmatpush.msra.mxu0 %v20
    %651 = vmatmul.f32.gmra.mxu0 %v634
    %v652 = vpop.f32.mrf.mxu0
    %v653 = vadd.f32 0.0, %v652
    %654 = vdwg.mxu0
    %vm655 = vcmp.eq.s32.totalorder %v59, 18
    %v656 = vsel %vm655, 1, 0
    %vm657 = vcmp.eq.s32.totalorder %v656, 1
    %v658 = vsel %vm657, %v653, %v630
    %659 = vrot.lane.b32.xlu0 %v57, 119
    %v660 = vpop.permute.xlu0 %659
    %v661 = vsub.f32 %v56, %v660
    %v662 = vmul.f32 %v661, %v661
    %663 = vmatpush.msra.mxu0 %v35
    %664 = vmatpush.msra.mxu0 %v34
    %665 = vmatpush.msra.mxu0 %v33
    %666 = vmatpush.msra.mxu0 %v32
    %667 = vmatpush.msra.mxu0 %v31
    %668 = vmatpush.msra.mxu0 %v30
    %669 = vmatpush.msra.mxu0 %v29
    %670 = vmatpush.msra.mxu0 %v28
    %671 = vmatpush.msra.mxu0 %v27
    %672 = vmatpush.msra.mxu0 %v26
    %673 = vmatpush.msra.mxu0 %v25
    %674 = vmatpush.msra.mxu0 %v24
    %675 = vmatpush.msra.mxu0 %v23
    %676 = vmatpush.msra.mxu0 %v22
    %677 = vmatpush.msra.mxu0 %v21
    %678 = vmatpush.msra.mxu0 %v20
    %679 = vmatmul.f32.gmra.mxu0 %v662
    %v680 = vpop.f32.mrf.mxu0
    %v681 = vadd.f32 0.0, %v680
    %682 = vdwg.mxu0
    %vm683 = vcmp.eq.s32.totalorder %v59, 19
    %v684 = vsel %vm683, 1, 0
    %vm685 = vcmp.eq.s32.totalorder %v684, 1
    %v686 = vsel %vm685, %v681, %v658
    %687 = vrot.lane.b32.xlu0 %v57, 118
    %v688 = vpop.permute.xlu0 %687
    %v689 = vsub.f32 %v56, %v688
    %v690 = vmul.f32 %v689, %v689
    %691 = vmatpush.msra.mxu0 %v35
    %692 = vmatpush.msra.mxu0 %v34
    %693 = vmatpush.msra.mxu0 %v33
    %694 = vmatpush.msra.mxu0 %v32
    %695 = vmatpush.msra.mxu0 %v31
    %696 = vmatpush.msra.mxu0 %v30
    %697 = vmatpush.msra.mxu0 %v29
    %698 = vmatpush.msra.mxu0 %v28
    %699 = vmatpush.msra.mxu0 %v27
    %700 = vmatpush.msra.mxu0 %v26
    %701 = vmatpush.msra.mxu0 %v25
    %702 = vmatpush.msra.mxu0 %v24
    %703 = vmatpush.msra.mxu0 %v23
    %704 = vmatpush.msra.mxu0 %v22
    %705 = vmatpush.msra.mxu0 %v21
    %706 = vmatpush.msra.mxu0 %v20
    %707 = vmatmul.f32.gmra.mxu0 %v690
    %v708 = vpop.f32.mrf.mxu0
    %v709 = vadd.f32 0.0, %v708
    %710 = vdwg.mxu0
    %vm711 = vcmp.eq.s32.totalorder %v59, 20
    %v712 = vsel %vm711, 1, 0
    %vm713 = vcmp.eq.s32.totalorder %v712, 1
    %v714 = vsel %vm713, %v709, %v686
    %v715 = vadd.f32 %v103, %v127
    %v716 = vsub.f32 %v715, %v714
    %v717 = vmul.f32 %v716, 0.5
    %v718 = vmul.f32 %v100, %v124
    %v719 = vmul.f32 %v718, %v80
    %v720 = vsub.f32 %v717, %v719
    %v721 = vmul.f32 %v100, %v100
    %v722 = vmul.f32 %v721, %v80
    %v723 = vsub.f32 %v103, %v722
    %v724 = vmax.f32 %v723, 0.0
    %v725 = vmul.f32 %v124, %v124
    %v726 = vmul.f32 %v725, %v80
    %v727 = vsub.f32 %v127, %v726
    %v728 = vmax.f32 %v727, 0.0
    %v729 = vmul.f32 %v724, %v728
    %vm730 = vcmask 171008
    %v731 = vsel %vm730, %v729, -inf
    %732 = vmax.xlane.f32.xlu0 %v731
    %v733 = vpop.xlane.xlu0 %732
    %v734 = vmul.f32 %v733, 1e-12
    %v735 = vadd.f32 %v734, 1e-30
    %v736 = vadd.f32 %v729, %v735
    %v737 = vrsqrt.pop %v736
    %v738 = vmul.f32 %v737, %v736
    %v739 = vmul.f32 %v738, %v737
    %v740 = vmul.f32 0.5, %v739
    %v741 = vsub.f32 1.5, %v740
    %v742 = vmul.f32 %v737, %v741
    %vm743 = vweird.f32 %v736
    %vm744 = vweird.f32 %v737
    %vm745 = vmor %vm743, %vm744
    %v746 = vsel %vm745, %v737, %v742
    %v747 = vmul.f32 %v720, %v746
    %v748 = vsel %vm730, %v747, -inf
    %749 = vmax.xlane.f32.xlu0 %v748
    %v750 = vpop.xlane.xlu0 %749
    %vm751 = vcmp.eq.f32.partialorder %v747, %v750
    %v752 = vsel %vm751, %v59, 21
    %v753 = vsel %vm730, %v752, 2147483647
    %v754 = vand.u32 %v753, 65535
    %v755 = vshra.s32 %v753, 16
    %v756 = vcvt.s32.f32 %v754
    %v757 = vcvt.s32.f32 %v755
    %758 = vmin.xlane.f32.xlu0 %v757
    %v759 = vpop.xlane.xlu0 %758
    %vm760 = vcmp.eq.f32.partialorder %v757, %v759
    %v761 = vsel %vm760, %v756, inf
    %762 = vmin.xlane.f32.xlu0 %v761
    %v763 = vpop.xlane.xlu0 %762
    %v764 = vcvt.f32.s32 %v763
    %v765 = vcvt.f32.s32 %v759
    %v766 = vshll.u32 %v765, 16
    %v767 = vadd.s32 %v766, %v764
    %v768 = vmul.f32 %v714, %v80
    %vm769 = vcmp.eq.s32.totalorder %v59, %v767
    %v770 = vsel %vm769, %v768, 0.0
    %v771 = vsel %vm730, %v770, 0.0
    %772 = vadd.xlane.f32.xlu0 %v771
    %v773 = vpop.xlane.xlu0 %772
    %v774 = vlaneseq
    %v775 = vshrl.u32 %v774, 7
    %s776 = smul.u32 0, 8
    %v777 = vstv %s776
    %v778 = vadd.s32 %v775, %v777
    %vm779 = vcmp.lt.s32.totalorder %v778, 4
    %v780 = vsel %vm779, %v773, 0.0
    %781 = vst [vmem:[#allocation2] sm:$0xff] %v780
    // Predicated region
    $region18: #{tpu_custom_call.1} parent=1 // pred_check
      _
    $region19: #{tpu_custom_call.1} parent=1 // pred_check_branch
      %783 = sbr.rel (0) target = $region21
    $region20: #{tpu_custom_call.1} parent=1 // pred_region
      %785 = vsyncadd [#allocation3], 0
      %s787 = sshll.u32 [#allocation2], 4
      %s788 = int_to_ptr.vmem [resolvable:$true] %s787
      %s789 = sshll.u32 %s4, 4
      %s790 = int_to_ptr.hbm [resolvable:$true] %s789
      %792 = dma.vmem_to_hbm [thread:$0]  %s788, 128, %s790, [#allocation3]
    $region21: #{tpu_custom_call.1} parent=1 // pred_fallthru
      _
    // Predicated region
    $region22: #{tpu_custom_call.1} parent=1 // pred_check
      _
    $region23: #{tpu_custom_call.1} parent=1 // pred_check_branch
      %794 = sbr.rel (0) target = $region25
    $region24: #{tpu_custom_call.1} parent=1 // pred_region
      %796 = dma.done [#allocation3], 128
    $region25: #{tpu_custom_call.1} parent=1 // pred_fallthru
      _
    %797 = vsyncpa [#allocation3], 1

</llo_original>
